<compile_context>
chip_gen: v7x
topology: tpu7x:2x2x1
jax: 0.10.0
libtpu: 0.0.40
codegen_flags: <defaults>
</compile_context>

<pallas_src>
import functools

import jax
import jax.numpy as jnp
from jax.experimental import pallas as pl
from jax.experimental.pallas import tpu as pltpu

LEAKY_SLOPE = 0.01  # torch.nn.LeakyReLU default negative_slope


def _round_up(n, m):
    return ((n + m - 1) // m) * m


def _fused_mlp_kernel(*refs, num_layers):
    """refs = (x, W0, b0, W1, b1, ..., W_{L-1}, b_{L-1}, out).

    Computes the whole MLP on one (TB, In_p) batch tile. Weights are already
    VMEM-resident (constant index_map); activations stay on-chip as values.
    """
    x_ref = refs[0]
    o_ref = refs[1 + 2 * num_layers]
    out_cols = o_ref.shape[-1]  # narrow, unpadded logit count

    h = x_ref[...]  # compute dtype (bf16 by default), lane-dense (TB, In_p)
    for i in range(num_layers):
        w_ref = refs[1 + 2 * i]
        b_ref = refs[2 + 2 * i]
        # MXU matmul with f32 accumulation; bias + LeakyReLU epilogue in f32
        # (VPU filler hidden under MXU/DMA at these shapes).
        y = jnp.dot(h, w_ref[...], preferred_element_type=jnp.float32)
        y = y + b_ref[...].astype(jnp.float32)  # (1, Out_p) broadcasts over rows
        if i < num_layers - 1:
            y = jnp.where(y >= 0.0, y, LEAKY_SLOPE * y)
            h = y.astype(w_ref.dtype)  # back to compute dtype for next MXU pass
        else:
            # Narrow masked store: only the real logits go back to HBM.
            o_ref[...] = y[:, :out_cols].astype(o_ref.dtype)


def _vmem_cap_bytes():
    """Upper bound for vmem_limit_bytes, derived from the chip's physical VMEM."""
    phys = 64 * 1024 * 1024  # conservative default = v7x per-TensorCore VMEM
    try:
        phys = int(pltpu.get_tpu_info().vmem_capacity_bytes)
    except Exception:
        pass
    # Leave generous headroom for compiler-internal scratch / semaphores.
    if phys <= 64 * 1024 * 1024:      # v7x
        return 40 * 1024 * 1024
    return 64 * 1024 * 1024           # v5e / v6e (128 MiB physical)


def corn_mlp_forward(x, params, *, compute_dtype=jnp.bfloat16, batch_tile=None):
    """Fused forward pass.

    x: (B, In) f32.  params: list of (W (in,out), b (1,out)) f32.
    Returns (B, num_classes-1) f32.
    """
    B, In = x.shape
    num_layers = len(params)
    dims = [In] + [W.shape[1] for (W, _) in params]
    dims_p = [_round_up(d, 128) for d in dims]  # lane-align every feature dim
    out_dim = dims[-1]

    itemsize = jnp.dtype(compute_dtype).itemsize

    # ---- batch tile selection --------------------------------------------
    ALIGN = 32  # multiple of 32 rows: clean sublane packing for any sub-32-bit dtype
    if batch_tile is not None:
        tb = max(ALIGN, _round_up(batch_tile, ALIGN))
    else:
        tb = min(_round_up(max(B, 1), ALIGN), 1024)
        # Ensure >=2 grid steps so v7x's second TensorCore gets work
        # (costs only ~0.35us/step on single-TC chips).
        if B > ALIGN and _round_up(B, tb) // tb < 2:
            tb = max(ALIGN, _round_up(-(-B // 2), ALIGN))
    B_p = _round_up(B, tb)

    # ---- input padding (fast path when already aligned) --------------------
    if B_p == B and dims_p[0] == In:
        x_p = x.astype(compute_dtype)  # no pad copy; cast fuses into caller's jit
    else:
        x_p = jnp.zeros((B_p, dims_p[0]), compute_dtype)
        x_p = x_p.at[:B, :In].set(x.astype(compute_dtype))

    padded_wb = []
    in_specs = [pl.BlockSpec((tb, dims_p[0]), lambda i: (i, 0))]
    for k, (W, b) in enumerate(params):
        fi, fo = W.shape
        Wp = jnp.zeros((dims_p[k], dims_p[k + 1]), compute_dtype)
        Wp = Wp.at[:fi, :fo].set(W.astype(compute_dtype))
        bp = jnp.zeros((1, dims_p[k + 1]), jnp.float32)
        bp = bp.at[:, :fo].set(b.reshape(1, -1).astype(jnp.float32))
        padded_wb += [Wp, bp]
        # Constant index maps -> weights/biases DMA'd once, stay VMEM-resident.
        in_specs.append(pl.BlockSpec((dims_p[k], dims_p[k + 1]), lambda i: (0, 0)))
        in_specs.append(pl.BlockSpec((1, dims_p[k + 1]), lambda i: (0, 0)))

    # Narrow f32 output: last dim equals the full array dim -> valid block,
    # and the dominant HBM stream shrinks from 128 f32 lanes/row to out_dim.
    out_spec = pl.BlockSpec((tb, out_dim), lambda i: (i, 0))
    out_shape = jax.ShapeDtypeStruct((B_p, out_dim), jnp.float32)

    # ---- VMEM accounting (double-buffer aware, generation-aware) ----------
    param_bytes = (
        sum(dims_p[k] * dims_p[k + 1] for k in range(num_layers)) * itemsize
        + sum(dims_p[1:]) * 4
    )
    vmem_bytes = (
        2 * tb * dims_p[0] * itemsize            # x tile, double-buffered
        + 2 * tb * _round_up(out_dim, 128) * 4   # out tile (lane-padded in VMEM), 2 bufs
        + 2 * param_bytes                        # Pallas double-buffers resident params too
        + 2 * tb * max(dims_p) * 4               # in-flight f32 activations / scratch
    )
    compiler_kwargs = dict(dimension_semantics=("parallel",))
    needed = int(1.5 * vmem_bytes)
    if needed > 14 * 1024 * 1024:  # below v5e's 16 MiB scoped-VMEM default
        cap = _vmem_cap_bytes()
        compiler_kwargs["vmem_limit_bytes"] = min(max(needed, 32 * 1024 * 1024), cap)

    kernel = functools.partial(_fused_mlp_kernel, num_layers=num_layers)
    y_p = pl.pallas_call(
        kernel,
        out_shape=out_shape,
        grid_spec=pltpu.PrefetchScalarGridSpec(
            num_scalar_prefetch=0,
            grid=(B_p // tb,),
            in_specs=in_specs,
            out_specs=out_spec,
        ),
        compiler_params=pltpu.CompilerParams(**compiler_kwargs),
    )(x_p, *padded_wb)

    # Only a row slice (and only when the batch was ragged); no column slice.
    return y_p if B_p == B else y_p[:B]


def init_corn_mlp_params(key, input_size, hidden_units, num_classes,
                         dtype=jnp.float32):
    """Mirrors torch.nn.Linear default init (uniform +/- 1/sqrt(fan_in)).

    Returns list of (W, b) with W stored transposed as (in_features, out_features).
    """
    params = []
    dims = [input_size] + list(hidden_units) + [num_classes - 1]
    for i in range(len(dims) - 1):
        fan_in, fan_out = dims[i], dims[i + 1]
        key, kw, kb = jax.random.split(key, 3)
        bound = 1.0 / float(fan_in) ** 0.5
        W = jax.random.uniform(kw, (fan_in, fan_out), dtype=dtype,
                               minval=-bound, maxval=bound)
        b = jax.random.uniform(kb, (1, fan_out), dtype=dtype,
                               minval=-bound, maxval=bound)
        params.append((W, b))
    return params


def _reference_forward(x, params, compute_dtype=jnp.bfloat16):
    """Plain-JAX reference mimicking the kernel's bf16-MXU / f32-epilogue path."""
    n = len(params)
    h = x.astype(compute_dtype)
    out = None
    for i, (W, b) in enumerate(params):
        y = jnp.dot(h, W.astype(compute_dtype),
                    preferred_element_type=jnp.float32)
        y = y + b.astype(jnp.float32)
        if i < n - 1:
            y = jnp.where(y >= 0.0, y, LEAKY_SLOPE * y)
            h = y.astype(compute_dtype)
        else:
            out = y
    return out


if __name__ == "__main__":
    # Small shapes consistent with the module:
    # batch=8, input_size=32, hidden_units=(64, 32), num_classes=5 -> out 4
    batch = 8
    input_size = 32
    hidden_units = (64, 32)
    num_classes = 5

    key = jax.random.PRNGKey(0)
    key, kx = jax.random.split(key)
    x = jax.random.normal(kx, (batch, input_size), dtype=jnp.float32)
    params = init_corn_mlp_params(key, input_size, hidden_units, num_classes)

    out = jax.block_until_ready(corn_mlp_forward(x, params))
    ref = _reference_forward(x, params)
    assert out.shape == (batch, num_classes - 1), out.shape
    assert jnp.allclose(out, ref, atol=1e-4, rtol=1e-4), "mismatch vs reference"

    # Ragged batch + explicit tile -> grid > 1, row padding, narrow masked store.
    key, kx2 = jax.random.split(key)
    x2 = jax.random.normal(kx2, (100, input_size), dtype=jnp.float32)
    out2 = jax.block_until_ready(corn_mlp_forward(x2, params, batch_tile=32))
    ref2 = _reference_forward(x2, params)
    assert out2.shape == (100, num_classes - 1), out2.shape
    assert jnp.allclose(out2, ref2, atol=1e-4, rtol=1e-4), "tiled mismatch vs reference"

    # Aligned shapes -> fast path (no wrapper pad copy) + auto tile split so the
    # grid has >=2 steps (v7x second-TensorCore coverage).
    key, kx3, kp3 = jax.random.split(key, 3)
    params3 = init_corn_mlp_params(kp3, 128, hidden_units, num_classes)
    x3 = jax.random.normal(kx3, (64, 128), dtype=jnp.float32)
    out3 = jax.block_until_ready(corn_mlp_forward(x3, params3))
    ref3 = _reference_forward(x3, params3)
    assert out3.shape == (64, num_classes - 1), out3.shape
    assert jnp.allclose(out3, ref3, atol=1e-4, rtol=1e-4), "aligned mismatch vs reference"

    print("KERNEL_OK")
</pallas_src>

<mosaic_0001>
module attributes {stable_mosaic.version = 11 : i64} {
  func.func @_fused_mlp_kernel(%arg0: i32, %arg1: memref<32x128xbf16, #tpu.memory_space<vmem>>, %arg2: memref<128x128xbf16, #tpu.memory_space<vmem>>, %arg3: memref<1x128xf32, #tpu.memory_space<vmem>>, %arg4: memref<128x128xbf16, #tpu.memory_space<vmem>>, %arg5: memref<1x128xf32, #tpu.memory_space<vmem>>, %arg6: memref<128x128xbf16, #tpu.memory_space<vmem>>, %arg7: memref<1x128xf32, #tpu.memory_space<vmem>>, %arg8: memref<32x4xf32, #tpu.memory_space<vmem>>) attributes {dimension_semantics = [#tpu.dimension_semantics<parallel>], iteration_bounds = array<i64: 1>, scalar_prefetch = 0 : i64, scratch_operands = 0 : i64, tpu.core_type = #tpu.core_type<tc>, window_params = [{transform_indices = @transform_0, window_bounds = array<i64: 32, 128>}, {pipeline_mode = #tpu.pipeline_mode<synchronous>, transform_indices = @transform_1, window_bounds = array<i64: 128, 128>}, {pipeline_mode = #tpu.pipeline_mode<synchronous>, transform_indices = @transform_2, window_bounds = array<i64: 1, 128>}, {pipeline_mode = #tpu.pipeline_mode<synchronous>, transform_indices = @transform_3, window_bounds = array<i64: 128, 128>}, {pipeline_mode = #tpu.pipeline_mode<synchronous>, transform_indices = @transform_4, window_bounds = array<i64: 1, 128>}, {pipeline_mode = #tpu.pipeline_mode<synchronous>, transform_indices = @transform_5, window_bounds = array<i64: 128, 128>}, {pipeline_mode = #tpu.pipeline_mode<synchronous>, transform_indices = @transform_6, window_bounds = array<i64: 1, 128>}, {transform_indices = @transform_7, window_bounds = array<i64: 32, 4>}]} {
    %c0 = arith.constant 0 : index
    %c0_0 = arith.constant 0 : index
    %0 = vector.load %arg1[%c0, %c0_0] : memref<32x128xbf16, #tpu.memory_space<vmem>>, vector<32x128xbf16>
    %c0_1 = arith.constant 0 : index
    %c0_2 = arith.constant 0 : index
    %1 = vector.load %arg2[%c0_1, %c0_2] : memref<128x128xbf16, #tpu.memory_space<vmem>>, vector<128x128xbf16>
    %cst = arith.constant dense<0.000000e+00> : vector<32x128xf32>
    %2 = tpu.matmul %0, %1, %cst {dimension_numbers = #tpu.dot_dimension_numbers<[1], [0], [0], [1], [0, 0, 1, 1], [], []>} : vector<32x128xbf16>, vector<128x128xbf16>, vector<32x128xf32> -> vector<32x128xf32>
    %c0_3 = arith.constant 0 : index
    %c0_4 = arith.constant 0 : index
    %3 = vector.load %arg3[%c0_3, %c0_4] : memref<1x128xf32, #tpu.memory_space<vmem>>, vector<1x128xf32>
    %4 = vector.broadcast %3 : vector<1x128xf32> to vector<32x128xf32>
    %5 = arith.addf %2, %4 : vector<32x128xf32>
    %cst_5 = arith.constant 0.000000e+00 : f32
    %6 = vector.broadcast %cst_5 : f32 to vector<32x128xf32>
    %7 = arith.cmpf oge, %5, %6 : vector<32x128xf32>
    %cst_6 = arith.constant 0.00999999977 : f32
    %8 = vector.broadcast %cst_6 : f32 to vector<32x128xf32>
    %9 = arith.mulf %8, %5 : vector<32x128xf32>
    %10 = arith.select %7, %5, %9 : vector<32x128xi1>, vector<32x128xf32>
    %11 = arith.truncf %10 : vector<32x128xf32> to vector<32x128xbf16>
    %c0_7 = arith.constant 0 : index
    %c0_8 = arith.constant 0 : index
    %12 = vector.load %arg4[%c0_7, %c0_8] : memref<128x128xbf16, #tpu.memory_space<vmem>>, vector<128x128xbf16>
    %cst_9 = arith.constant dense<0.000000e+00> : vector<32x128xf32>
    %13 = tpu.matmul %11, %12, %cst_9 {dimension_numbers = #tpu.dot_dimension_numbers<[1], [0], [0], [1], [0, 0, 1, 1], [], []>} : vector<32x128xbf16>, vector<128x128xbf16>, vector<32x128xf32> -> vector<32x128xf32>
    %c0_10 = arith.constant 0 : index
    %c0_11 = arith.constant 0 : index
    %14 = vector.load %arg5[%c0_10, %c0_11] : memref<1x128xf32, #tpu.memory_space<vmem>>, vector<1x128xf32>
    %15 = vector.broadcast %14 : vector<1x128xf32> to vector<32x128xf32>
    %16 = arith.addf %13, %15 : vector<32x128xf32>
    %cst_12 = arith.constant 0.000000e+00 : f32
    %17 = vector.broadcast %cst_12 : f32 to vector<32x128xf32>
    %18 = arith.cmpf oge, %16, %17 : vector<32x128xf32>
    %cst_13 = arith.constant 0.00999999977 : f32
    %19 = vector.broadcast %cst_13 : f32 to vector<32x128xf32>
    %20 = arith.mulf %19, %16 : vector<32x128xf32>
    %21 = arith.select %18, %16, %20 : vector<32x128xi1>, vector<32x128xf32>
    %22 = arith.truncf %21 : vector<32x128xf32> to vector<32x128xbf16>
    %c0_14 = arith.constant 0 : index
    %c0_15 = arith.constant 0 : index
    %23 = vector.load %arg6[%c0_14, %c0_15] : memref<128x128xbf16, #tpu.memory_space<vmem>>, vector<128x128xbf16>
    %cst_16 = arith.constant dense<0.000000e+00> : vector<32x128xf32>
    %24 = tpu.matmul %22, %23, %cst_16 {dimension_numbers = #tpu.dot_dimension_numbers<[1], [0], [0], [1], [0, 0, 1, 1], [], []>} : vector<32x128xbf16>, vector<128x128xbf16>, vector<32x128xf32> -> vector<32x128xf32>
    %c0_17 = arith.constant 0 : index
    %c0_18 = arith.constant 0 : index
    %25 = vector.load %arg7[%c0_17, %c0_18] : memref<1x128xf32, #tpu.memory_space<vmem>>, vector<1x128xf32>
    %26 = vector.broadcast %25 : vector<1x128xf32> to vector<32x128xf32>
    %27 = arith.addf %24, %26 : vector<32x128xf32>
    %28 = vector.extract_strided_slice %27 {offsets = [0, 0], sizes = [32, 4], strides = [1, 1]} : vector<32x128xf32> to vector<32x4xf32>
    %c0_19 = arith.constant 0 : index
    %c0_20 = arith.constant 0 : index
    %29 = vector.load %arg8[%c0_19, %c0_20] : memref<32x4xf32, #tpu.memory_space<vmem>>, vector<32x4xf32>
    tpu.vector_store %arg8[%c0_19, %c0_20], %28 {strides = array<i32>} : memref<32x4xf32, #tpu.memory_space<vmem>>, vector<32x4xf32>,
    return
  }
  func.func @transform_0(%arg0: i32) -> (i32, i32) {
    %c0_i32 = arith.constant 0 : i32
    %c0_i32_0 = arith.constant 0 : i32
    return %arg0, %c0_i32 : i32, i32
  }
  func.func @transform_1(%arg0: i32) -> (i32, i32) {
    %c0_i32 = arith.constant 0 : i32
    %c0_i32_0 = arith.constant 0 : i32
    %c0_i32_1 = arith.constant 0 : i32
    return %c0_i32, %c0_i32_0 : i32, i32
  }
  func.func @transform_2(%arg0: i32) -> (i32, i32) {
    %c0_i32 = arith.constant 0 : i32
    %c0_i32_0 = arith.constant 0 : i32
    %c0_i32_1 = arith.constant 0 : i32
    return %c0_i32, %c0_i32_0 : i32, i32
  }
  func.func @transform_3(%arg0: i32) -> (i32, i32) {
    %c0_i32 = arith.constant 0 : i32
    %c0_i32_0 = arith.constant 0 : i32
    %c0_i32_1 = arith.constant 0 : i32
    return %c0_i32, %c0_i32_0 : i32, i32
  }
  func.func @transform_4(%arg0: i32) -> (i32, i32) {
    %c0_i32 = arith.constant 0 : i32
    %c0_i32_0 = arith.constant 0 : i32
    %c0_i32_1 = arith.constant 0 : i32
    return %c0_i32, %c0_i32_0 : i32, i32
  }
  func.func @transform_5(%arg0: i32) -> (i32, i32) {
    %c0_i32 = arith.constant 0 : i32
    %c0_i32_0 = arith.constant 0 : i32
    %c0_i32_1 = arith.constant 0 : i32
    return %c0_i32, %c0_i32_0 : i32, i32
  }
  func.func @transform_6(%arg0: i32) -> (i32, i32) {
    %c0_i32 = arith.constant 0 : i32
    %c0_i32_0 = arith.constant 0 : i32
    %c0_i32_1 = arith.constant 0 : i32
    return %c0_i32, %c0_i32_0 : i32, i32
  }
  func.func @transform_7(%arg0: i32) -> (i32, i32) {
    %c0_i32 = arith.constant 0 : i32
    %c0_i32_0 = arith.constant 0 : i32
    return %arg0, %c0_i32 : i32, i32
  }
}

</mosaic_0001>

<llo_original>
// kernel: tpu_custom_call.1
$region0: #{tpu_custom_call.1}
  #allocation0 [shape = 'u32[]', space=smem, size = 0x4, offset = 0x4, fixed_abs, tag = 'smem constant byte address 0x4 - core index']
  #allocation1 [shape = 'u32[144,128]{1,0:T(1,128)}', space=vmem, size = 0x12000, scoped, tag = 'internal scratch']
  %s0 = inlined_call_operand.hbm [shape: bf16[32,128], index: 0, kind: input, shape index: {}]
  %s1 = inlined_call_operand.hbm [shape: bf16[128,128], index: 1, kind: input, shape index: {}]
  %s2 = inlined_call_operand.vmem [shape: f32[1,128], index: 2, kind: input, shape index: {}]
  %s3 = inlined_call_operand.hbm [shape: bf16[128,128], index: 3, kind: input, shape index: {}]
  %s4 = inlined_call_operand.vmem [shape: f32[1,128], index: 4, kind: input, shape index: {}]
  %s5 = inlined_call_operand.hbm [shape: bf16[128,128], index: 5, kind: input, shape index: {}]
  %s6 = inlined_call_operand.vmem [shape: f32[1,128], index: 6, kind: input, shape index: {}]
  %s7 = inlined_call_operand.vmem [shape: f32[32,4], index: 7, kind: output, shape index: {}]
  %s8 = sld [smem:[#allocation0]]
  $region54: #{tpu_custom_call.1} parent=0
    _
  %s10 = ssub.s32 1, %s8
  %s11 = scalar_select 0, %s10, %s8
  $region1: #{tpu_custom_call.1} parent=0
    #allocation2 [shape = 'u8[8192]{0}', space=vmem, size = 0x2000, scoped, tag = 'input window, operand 0, single buffered']
    #allocation3 [shape = 's32[1]{0}', space=sflag, size = 0x4, scoped, tag = 'scoped memory for tpu_custom_call.1']
    #allocation4 [shape = 'u8[32768]{0}', space=vmem, size = 0x8000, scoped, tag = 'input window, operand 1, single buffered']
    #allocation5 [shape = 's32[1]{0}', space=sflag, size = 0x4, scoped, tag = 'scoped memory for tpu_custom_call.1']
    #allocation6 [shape = 'u8[32768]{0}', space=vmem, size = 0x8000, scoped, tag = 'input window, operand 3, single buffered']
    #allocation7 [shape = 'u8[32768]{0}', space=vmem, size = 0x8000, scoped, tag = 'input window, operand 5, single buffered']
    #allocation8 [shape = 's32[1]{0}', space=sflag, size = 0x4, scoped, tag = 'scoped memory for tpu_custom_call.1']
    %12 = vsyncpa [#allocation3], 0
    %13 = vsyncpa [#allocation5], 0
    %14 = vsyncpa [#allocation8], 0
    // Predicated region
    $region2: #{tpu_custom_call.1} parent=1 // pred_check
      _
    $region3: #{tpu_custom_call.1} parent=1 // pred_check_branch
      %16 = sbr.rel (0) target = $region5
    $region4: #{tpu_custom_call.1} parent=1 // pred_region
      %s18 = ssub.s32 256, 256
      %19 = vsyncadd [#allocation3], %s18
      %s20 = sshll.u32 [#allocation2], 4
      %s21 = int_to_ptr.vmem [resolvable:$true] %s20
      %26 = dma.hbm_to_vmem [thread:$0]  %s0, 256, %s21, [#allocation3], 64, 64, 4
    $region5: #{tpu_custom_call.1} parent=1 // pred_fallthru
      _
    // Predicated region
    $region6: #{tpu_custom_call.1} parent=1 // pred_check
      _
    $region7: #{tpu_custom_call.1} parent=1 // pred_check_branch
      %28 = sbr.rel (0) target = $region9
    $region8: #{tpu_custom_call.1} parent=1 // pred_region
      %s30 = ssub.s32 1024, 1024
      %31 = vsyncadd [#allocation5], %s30
      %s32 = sshll.u32 [#allocation4], 4
      %s33 = int_to_ptr.vmem [resolvable:$true] %s32
      %38 = dma.hbm_to_vmem [thread:$0]  %s1, 1024, %s33, [#allocation5], 64, 64, 4
    $region9: #{tpu_custom_call.1} parent=1 // pred_fallthru
      _
    // Predicated region
    $region10: #{tpu_custom_call.1} parent=1 // pred_check
      _
    $region11: #{tpu_custom_call.1} parent=1 // pred_check_branch
      %40 = sbr.rel (0) target = $region13
    $region12: #{tpu_custom_call.1} parent=1 // pred_region
      _
    $region13: #{tpu_custom_call.1} parent=1 // pred_fallthru
      _
    // Predicated region
    $region14: #{tpu_custom_call.1} parent=1 // pred_check
      _
    $region15: #{tpu_custom_call.1} parent=1 // pred_check_branch
      %42 = sbr.rel (0) target = $region17
    $region16: #{tpu_custom_call.1} parent=1 // pred_region
      %s44 = ssub.s32 1024, 1024
      %45 = vsyncadd [#allocation5], %s44
      %s46 = sshll.u32 [#allocation6], 4
      %s47 = int_to_ptr.vmem [resolvable:$true] %s46
      %52 = dma.hbm_to_vmem [thread:$0]  %s3, 1024, %s47, [#allocation5], 64, 64, 4
    $region17: #{tpu_custom_call.1} parent=1 // pred_fallthru
      _
    // Predicated region
    $region18: #{tpu_custom_call.1} parent=1 // pred_check
      _
    $region19: #{tpu_custom_call.1} parent=1 // pred_check_branch
      %54 = sbr.rel (0) target = $region21
    $region20: #{tpu_custom_call.1} parent=1 // pred_region
      _
    $region21: #{tpu_custom_call.1} parent=1 // pred_fallthru
      _
    // Predicated region
    $region22: #{tpu_custom_call.1} parent=1 // pred_check
      _
    $region23: #{tpu_custom_call.1} parent=1 // pred_check_branch
      %56 = sbr.rel (0) target = $region25
    $region24: #{tpu_custom_call.1} parent=1 // pred_region
      %s58 = ssub.s32 1024, 1024
      %59 = vsyncadd [#allocation8], %s58
      %s60 = sshll.u32 [#allocation7], 4
      %s61 = int_to_ptr.vmem [resolvable:$true] %s60
      %66 = dma.hbm_to_vmem [thread:$0]  %s5, 1024, %s61, [#allocation8], 64, 64, 4
    $region25: #{tpu_custom_call.1} parent=1 // pred_fallthru
      _
    // Predicated region
    $region26: #{tpu_custom_call.1} parent=1 // pred_check
      _
    $region27: #{tpu_custom_call.1} parent=1 // pred_check_branch
      %68 = sbr.rel (0) target = $region29
    $region28: #{tpu_custom_call.1} parent=1 // pred_region
      _
    $region29: #{tpu_custom_call.1} parent=1 // pred_fallthru
      _
    // Predicated region
    $region30: #{tpu_custom_call.1} parent=1 // pred_check
      _
    $region31: #{tpu_custom_call.1} parent=1 // pred_check_branch
      %70 = sbr.rel (0) target = $region33
    $region32: #{tpu_custom_call.1} parent=1 // pred_region
      %71 = dma.done [#allocation3], 256
    $region33: #{tpu_custom_call.1} parent=1 // pred_fallthru
      _
    // Predicated region
    $region34: #{tpu_custom_call.1} parent=1 // pred_check
      _
    $region35: #{tpu_custom_call.1} parent=1 // pred_check_branch
      %73 = sbr.rel (0) target = $region37
    $region36: #{tpu_custom_call.1} parent=1 // pred_region
      %74 = dma.done [#allocation5], 1024
    $region37: #{tpu_custom_call.1} parent=1 // pred_fallthru
      _
    // Predicated region
    $region38: #{tpu_custom_call.1} parent=1 // pred_check
      _
    $region39: #{tpu_custom_call.1} parent=1 // pred_check_branch
      %76 = sbr.rel (0) target = $region41
    $region40: #{tpu_custom_call.1} parent=1 // pred_region
      %77 = dma.done [#allocation5], 1024
    $region41: #{tpu_custom_call.1} parent=1 // pred_fallthru
      _
    // Predicated region
    $region42: #{tpu_custom_call.1} parent=1 // pred_check
      _
    $region43: #{tpu_custom_call.1} parent=1 // pred_check_branch
      %79 = sbr.rel (0) target = $region45
    $region44: #{tpu_custom_call.1} parent=1 // pred_region
      %80 = dma.done [#allocation8], 1024
    $region45: #{tpu_custom_call.1} parent=1 // pred_fallthru
      _
    %v82 = vld [vmem:[#allocation2] sm:$0xf]
    %v83 = vld [vmem:[#allocation2 + $0x4] sm:$0xf]
    %v84 = vld [vmem:[#allocation2 + $0x8] sm:$0xf]
    %v85 = vld [vmem:[#allocation2 + $0xc] sm:$0xf]
    %v86 = vld [vmem:[#allocation4] sm:$0xf]
    %v87 = vld [vmem:[#allocation4 + $0x4] sm:$0xf]
    %v88 = vld [vmem:[#allocation4 + $0x8] sm:$0xf]
    %v89 = vld [vmem:[#allocation4 + $0xc] sm:$0xf]
    %v90 = vld [vmem:[#allocation4 + $0x10] sm:$0xf]
    %v91 = vld [vmem:[#allocation4 + $0x14] sm:$0xf]
    %v92 = vld [vmem:[#allocation4 + $0x18] sm:$0xf]
    %v93 = vld [vmem:[#allocation4 + $0x1c] sm:$0xf]
    %v94 = vld [vmem:[#allocation4 + $0x20] sm:$0xf]
    %v95 = vld [vmem:[#allocation4 + $0x24] sm:$0xf]
    %v96 = vld [vmem:[#allocation4 + $0x28] sm:$0xf]
    %v97 = vld [vmem:[#allocation4 + $0x2c] sm:$0xf]
    %v98 = vld [vmem:[#allocation4 + $0x30] sm:$0xf]
    %v99 = vld [vmem:[#allocation4 + $0x34] sm:$0xf]
    %v100 = vld [vmem:[#allocation4 + $0x38] sm:$0xf]
    %v101 = vld [vmem:[#allocation4 + $0x3c] sm:$0xf]
    %v102 = vld [vmem:[%s2] sm:$0x1]
    %v104 = vlaneseq
    %v105 = vshrl.u32 %v104, 7
    %v106 = vsub.s32 0, %v105
    %v107 = vrot.slane %v102, %v106
    %v113 = vunpack.c.l.b16 %v82
    %v114 = vunpack.c.l.b16 %v83
    %v115 = vunpack.c.l.b16 %v84
    %v116 = vunpack.c.l.b16 %v85
    %v117 = vpack.c.b16 %v114, %v113
    %v118 = vpack.c.b16 %v116, %v115
    %v137 = vunpack.c.l.b16 %v86
    %v138 = vunpack.c.l.b16 %v87
    %v139 = vunpack.c.l.b16 %v88
    %v140 = vunpack.c.l.b16 %v89
    %v141 = vunpack.c.l.b16 %v90
    %v142 = vunpack.c.l.b16 %v91
    %v143 = vunpack.c.l.b16 %v92
    %v144 = vunpack.c.l.b16 %v93
    %v145 = vunpack.c.l.b16 %v94
    %v146 = vunpack.c.l.b16 %v95
    %v147 = vunpack.c.l.b16 %v96
    %v148 = vunpack.c.l.b16 %v97
    %v149 = vunpack.c.l.b16 %v98
    %v150 = vunpack.c.l.b16 %v99
    %v151 = vunpack.c.l.b16 %v100
    %v152 = vunpack.c.l.b16 %v101
    %v153 = vpack.c.b16 %v138, %v137
    %v154 = vpack.c.b16 %v140, %v139
    %v155 = vpack.c.b16 %v142, %v141
    %v156 = vpack.c.b16 %v144, %v143
    %v157 = vpack.c.b16 %v146, %v145
    %v158 = vpack.c.b16 %v148, %v147
    %v159 = vpack.c.b16 %v150, %v149
    %v160 = vpack.c.b16 %v152, %v151
    %169 = vmatprep.subr.bf16.mxu0 0
    %170 = vmatpush1.bf16.msra.mxu0 %v153
    %171 = vmatprep.subr.bf16.mxu0 0
    %172 = vmatpush1.bf16.msra.mxu0 %v154
    %173 = vmatprep.subr.bf16.mxu0 0
    %174 = vmatpush1.bf16.msra.mxu0 %v155
    %175 = vmatprep.subr.bf16.mxu0 0
    %176 = vmatpush1.bf16.msra.mxu0 %v156
    %177 = vmatprep.subr.bf16.mxu0 0
    %178 = vmatpush1.bf16.msra.mxu0 %v157
    %179 = vmatprep.subr.bf16.mxu0 0
    %180 = vmatpush1.bf16.msra.mxu0 %v158
    %181 = vmatprep.subr.bf16.mxu0 0
    %182 = vmatpush1.bf16.msra.mxu0 %v159
    %183 = vmatprep.subr.bf16.mxu0 0
    %184 = vmatpush1.bf16.msra.mxu0 %v160
    %185 = vmatprep.subr.bf16.mxu0 0
    %186 = vmatpush1.bf16.msra.mxu0 0
    %187 = vmatprep.subr.bf16.mxu0 0
    %188 = vmatpush1.bf16.msra.mxu0 0
    %189 = vmatprep.subr.bf16.mxu0 0
    %190 = vmatpush1.bf16.msra.mxu0 0
    %191 = vmatprep.subr.bf16.mxu0 0
    %192 = vmatpush1.bf16.msra.mxu0 0
    %193 = vmatprep.subr.bf16.mxu0 0
    %194 = vmatpush1.bf16.msra.mxu0 0
    %195 = vmatprep.subr.bf16.mxu0 0
    %196 = vmatpush1.bf16.msra.mxu0 0
    %197 = vmatprep.subr.bf16.mxu0 0
    %198 = vmatpush1.bf16.msra.mxu0 0
    %199 = vmatprep.subr.bf16.mxu0 0
    %200 = vmatpush1.bf16.msra.mxu0 0
    %201 = vmatprep.mubr.bf16.mxu0 0
    %202 = vmatmul.mubr.bf16.gmra.mrb[0].mxu0 %v117
    %v203 = vpop.f32.mrb[0].mxu0
    %v204 = vadd.f32 %v107, %v203
    %v205 = vpop.f32.mrb[0].mxu0
    %v206 = vpop.f32.mrb[0].mxu0
    %v207 = vadd.f32 %v107, %v206
    %v208 = vpop.f32.mrb[0].mxu0
    %209 = vmatprep.mubr.bf16.mxu0 0
    %210 = vmatmul.mubr.bf16.gmra.mrb[0].mxu0 %v118
    %v211 = vpop.f32.mrb[0].mxu0
    %v212 = vadd.f32 %v107, %v211
    %v213 = vpop.f32.mrb[0].mxu0
    %v214 = vpop.f32.mrb[0].mxu0
    %v215 = vadd.f32 %v107, %v214
    %v216 = vpop.f32.mrb[0].mxu0
    %217 = vdwg.mxu0
    %vm218 = vcmp.ge.f32.partialorder %v204, 0.0
    %vm219 = vcmp.ge.f32.partialorder %v207, 0.0
    %vm220 = vcmp.ge.f32.partialorder %v212, 0.0
    %vm221 = vcmp.ge.f32.partialorder %v215, 0.0
    %v222 = vmul.f32 %v204, 0.01
    %v223 = vmul.f32 %v207, 0.01
    %v224 = vmul.f32 %v212, 0.01
    %v225 = vmul.f32 %v215, 0.01
    %v226 = vsel %vm218, %v204, %v222
    %v227 = vsel %vm219, %v207, %v223
    %v228 = vsel %vm220, %v212, %v224
    %v229 = vsel %vm221, %v215, %v225
    %v230 = vpack.c.bf16 %v227, %v226
    %v231 = vpack.c.bf16 %v229, %v228
    %v232 = vld [vmem:[#allocation6] sm:$0xf]
    %v233 = vld [vmem:[#allocation6 + $0x4] sm:$0xf]
    %v234 = vld [vmem:[#allocation6 + $0x8] sm:$0xf]
    %v235 = vld [vmem:[#allocation6 + $0xc] sm:$0xf]
    %v236 = vld [vmem:[#allocation6 + $0x10] sm:$0xf]
    %v237 = vld [vmem:[#allocation6 + $0x14] sm:$0xf]
    %v238 = vld [vmem:[#allocation6 + $0x18] sm:$0xf]
    %v239 = vld [vmem:[#allocation6 + $0x1c] sm:$0xf]
    %v240 = vld [vmem:[#allocation6 + $0x20] sm:$0xf]
    %v241 = vld [vmem:[#allocation6 + $0x24] sm:$0xf]
    %v242 = vld [vmem:[#allocation6 + $0x28] sm:$0xf]
    %v243 = vld [vmem:[#allocation6 + $0x2c] sm:$0xf]
    %v244 = vld [vmem:[#allocation6 + $0x30] sm:$0xf]
    %v245 = vld [vmem:[#allocation6 + $0x34] sm:$0xf]
    %v246 = vld [vmem:[#allocation6 + $0x38] sm:$0xf]
    %v247 = vld [vmem:[#allocation6 + $0x3c] sm:$0xf]
    %v248 = vld [vmem:[%s4] sm:$0x1]
    %v250 = vlaneseq
    %v251 = vshrl.u32 %v250, 7
    %v252 = vsub.s32 0, %v251
    %v253 = vrot.slane %v248, %v252
    %v271 = vunpack.c.l.b16 %v232
    %v272 = vunpack.c.l.b16 %v233
    %v273 = vunpack.c.l.b16 %v234
    %v274 = vunpack.c.l.b16 %v235
    %v275 = vunpack.c.l.b16 %v236
    %v276 = vunpack.c.l.b16 %v237
    %v277 = vunpack.c.l.b16 %v238
    %v278 = vunpack.c.l.b16 %v239
    %v279 = vunpack.c.l.b16 %v240
    %v280 = vunpack.c.l.b16 %v241
    %v281 = vunpack.c.l.b16 %v242
    %v282 = vunpack.c.l.b16 %v243
    %v283 = vunpack.c.l.b16 %v244
    %v284 = vunpack.c.l.b16 %v245
    %v285 = vunpack.c.l.b16 %v246
    %v286 = vunpack.c.l.b16 %v247
    %v287 = vpack.c.b16 %v272, %v271
    %v288 = vpack.c.b16 %v274, %v273
    %v289 = vpack.c.b16 %v276, %v275
    %v290 = vpack.c.b16 %v278, %v277
    %v291 = vpack.c.b16 %v280, %v279
    %v292 = vpack.c.b16 %v282, %v281
    %v293 = vpack.c.b16 %v284, %v283
    %v294 = vpack.c.b16 %v286, %v285
    %303 = vmatprep.subr.bf16.mxu0 0
    %304 = vmatpush1.bf16.msra.mxu0 %v287
    %305 = vmatprep.subr.bf16.mxu0 0
    %306 = vmatpush1.bf16.msra.mxu0 %v288
    %307 = vmatprep.subr.bf16.mxu0 0
    %308 = vmatpush1.bf16.msra.mxu0 %v289
    %309 = vmatprep.subr.bf16.mxu0 0
    %310 = vmatpush1.bf16.msra.mxu0 %v290
    %311 = vmatprep.subr.bf16.mxu0 0
    %312 = vmatpush1.bf16.msra.mxu0 %v291
    %313 = vmatprep.subr.bf16.mxu0 0
    %314 = vmatpush1.bf16.msra.mxu0 %v292
    %315 = vmatprep.subr.bf16.mxu0 0
    %316 = vmatpush1.bf16.msra.mxu0 %v293
    %317 = vmatprep.subr.bf16.mxu0 0
    %318 = vmatpush1.bf16.msra.mxu0 %v294
    %319 = vmatprep.subr.bf16.mxu0 0
    %320 = vmatpush1.bf16.msra.mxu0 0
    %321 = vmatprep.subr.bf16.mxu0 0
    %322 = vmatpush1.bf16.msra.mxu0 0
    %323 = vmatprep.subr.bf16.mxu0 0
    %324 = vmatpush1.bf16.msra.mxu0 0
    %325 = vmatprep.subr.bf16.mxu0 0
    %326 = vmatpush1.bf16.msra.mxu0 0
    %327 = vmatprep.subr.bf16.mxu0 0
    %328 = vmatpush1.bf16.msra.mxu0 0
    %329 = vmatprep.subr.bf16.mxu0 0
    %330 = vmatpush1.bf16.msra.mxu0 0
    %331 = vmatprep.subr.bf16.mxu0 0
    %332 = vmatpush1.bf16.msra.mxu0 0
    %333 = vmatprep.subr.bf16.mxu0 0
    %334 = vmatpush1.bf16.msra.mxu0 0
    %335 = vmatprep.mubr.bf16.mxu0 0
    %336 = vmatmul.mubr.bf16.gmra.mrb[0].mxu0 %v230
    %v337 = vpop.f32.mrb[0].mxu0
    %v338 = vadd.f32 %v253, %v337
    %v339 = vpop.f32.mrb[0].mxu0
    %v340 = vpop.f32.mrb[0].mxu0
    %v341 = vadd.f32 %v253, %v340
    %v342 = vpop.f32.mrb[0].mxu0
    %343 = vmatprep.mubr.bf16.mxu0 0
    %344 = vmatmul.mubr.bf16.gmra.mrb[0].mxu0 %v231
    %v345 = vpop.f32.mrb[0].mxu0
    %v346 = vadd.f32 %v253, %v345
    %v347 = vpop.f32.mrb[0].mxu0
    %v348 = vpop.f32.mrb[0].mxu0
    %v349 = vadd.f32 %v253, %v348
    %v350 = vpop.f32.mrb[0].mxu0
    %351 = vdwg.mxu0
    %vm352 = vcmp.ge.f32.partialorder %v338, 0.0
    %vm353 = vcmp.ge.f32.partialorder %v341, 0.0
    %vm354 = vcmp.ge.f32.partialorder %v346, 0.0
    %vm355 = vcmp.ge.f32.partialorder %v349, 0.0
    %v356 = vmul.f32 %v338, 0.01
    %v357 = vmul.f32 %v341, 0.01
    %v358 = vmul.f32 %v346, 0.01
    %v359 = vmul.f32 %v349, 0.01
    %v360 = vsel %vm352, %v338, %v356
    %v361 = vsel %vm353, %v341, %v357
    %v362 = vsel %vm354, %v346, %v358
    %v363 = vsel %vm355, %v349, %v359
    %v364 = vpack.c.bf16 %v361, %v360
    %v365 = vpack.c.bf16 %v363, %v362
    %v366 = vld [vmem:[#allocation7] sm:$0xf]
    %v367 = vld [vmem:[#allocation7 + $0x4] sm:$0xf]
    %v368 = vld [vmem:[#allocation7 + $0x8] sm:$0xf]
    %v369 = vld [vmem:[#allocation7 + $0xc] sm:$0xf]
    %v370 = vld [vmem:[#allocation7 + $0x10] sm:$0xf]
    %v371 = vld [vmem:[#allocation7 + $0x14] sm:$0xf]
    %v372 = vld [vmem:[#allocation7 + $0x18] sm:$0xf]
    %v373 = vld [vmem:[#allocation7 + $0x1c] sm:$0xf]
    %v374 = vld [vmem:[#allocation7 + $0x20] sm:$0xf]
    %v375 = vld [vmem:[#allocation7 + $0x24] sm:$0xf]
    %v376 = vld [vmem:[#allocation7 + $0x28] sm:$0xf]
    %v377 = vld [vmem:[#allocation7 + $0x2c] sm:$0xf]
    %v378 = vld [vmem:[#allocation7 + $0x30] sm:$0xf]
    %v379 = vld [vmem:[#allocation7 + $0x34] sm:$0xf]
    %v380 = vld [vmem:[#allocation7 + $0x38] sm:$0xf]
    %v381 = vld [vmem:[#allocation7 + $0x3c] sm:$0xf]
    %v382 = vld [vmem:[%s6] sm:$0x1]
    %v384 = vlaneseq
    %v385 = vshrl.u32 %v384, 7
    %v386 = vsub.s32 0, %v385
    %v387 = vrot.slane %v382, %v386
    %v405 = vunpack.c.l.b16 %v366
    %v406 = vunpack.c.l.b16 %v367
    %v407 = vunpack.c.l.b16 %v368
    %v408 = vunpack.c.l.b16 %v369
    %v409 = vunpack.c.l.b16 %v370
    %v410 = vunpack.c.l.b16 %v371
    %v411 = vunpack.c.l.b16 %v372
    %v412 = vunpack.c.l.b16 %v373
    %v413 = vunpack.c.l.b16 %v374
    %v414 = vunpack.c.l.b16 %v375
    %v415 = vunpack.c.l.b16 %v376
    %v416 = vunpack.c.l.b16 %v377
    %v417 = vunpack.c.l.b16 %v378
    %v418 = vunpack.c.l.b16 %v379
    %v419 = vunpack.c.l.b16 %v380
    %v420 = vunpack.c.l.b16 %v381
    %v421 = vpack.c.b16 %v406, %v405
    %v422 = vpack.c.b16 %v408, %v407
    %v423 = vpack.c.b16 %v410, %v409
    %v424 = vpack.c.b16 %v412, %v411
    %v425 = vpack.c.b16 %v414, %v413
    %v426 = vpack.c.b16 %v416, %v415
    %v427 = vpack.c.b16 %v418, %v417
    %v428 = vpack.c.b16 %v420, %v419
    %437 = vmatprep.subr.bf16.mxu0 0
    %438 = vmatpush1.bf16.msra.mxu0 %v421
    %439 = vmatprep.subr.bf16.mxu0 0
    %440 = vmatpush1.bf16.msra.mxu0 %v422
    %441 = vmatprep.subr.bf16.mxu0 0
    %442 = vmatpush1.bf16.msra.mxu0 %v423
    %443 = vmatprep.subr.bf16.mxu0 0
    %444 = vmatpush1.bf16.msra.mxu0 %v424
    %445 = vmatprep.subr.bf16.mxu0 0
    %446 = vmatpush1.bf16.msra.mxu0 %v425
    %447 = vmatprep.subr.bf16.mxu0 0
    %448 = vmatpush1.bf16.msra.mxu0 %v426
    %449 = vmatprep.subr.bf16.mxu0 0
    %450 = vmatpush1.bf16.msra.mxu0 %v427
    %451 = vmatprep.subr.bf16.mxu0 0
    %452 = vmatpush1.bf16.msra.mxu0 %v428
    %453 = vmatprep.subr.bf16.mxu0 0
    %454 = vmatpush1.bf16.msra.mxu0 0
    %455 = vmatprep.subr.bf16.mxu0 0
    %456 = vmatpush1.bf16.msra.mxu0 0
    %457 = vmatprep.subr.bf16.mxu0 0
    %458 = vmatpush1.bf16.msra.mxu0 0
    %459 = vmatprep.subr.bf16.mxu0 0
    %460 = vmatpush1.bf16.msra.mxu0 0
    %461 = vmatprep.subr.bf16.mxu0 0
    %462 = vmatpush1.bf16.msra.mxu0 0
    %463 = vmatprep.subr.bf16.mxu0 0
    %464 = vmatpush1.bf16.msra.mxu0 0
    %465 = vmatprep.subr.bf16.mxu0 0
    %466 = vmatpush1.bf16.msra.mxu0 0
    %467 = vmatprep.subr.bf16.mxu0 0
    %468 = vmatpush1.bf16.msra.mxu0 0
    %469 = vmatprep.mubr.bf16.mxu0 0
    %470 = vmatmul.mubr.bf16.gmra.mrb[0].mxu0 %v364
    %v471 = vpop.f32.mrb[0].mxu0
    %v472 = vadd.f32 %v387, %v471
    %v473 = vpop.f32.mrb[0].mxu0
    %v474 = vpop.f32.mrb[0].mxu0
    %v475 = vadd.f32 %v387, %v474
    %v476 = vpop.f32.mrb[0].mxu0
    %477 = vmatprep.mubr.bf16.mxu0 0
    %478 = vmatmul.mubr.bf16.gmra.mrb[0].mxu0 %v365
    %v479 = vpop.f32.mrb[0].mxu0
    %v480 = vadd.f32 %v387, %v479
    %v481 = vpop.f32.mrb[0].mxu0
    %v482 = vpop.f32.mrb[0].mxu0
    %v483 = vadd.f32 %v387, %v482
    %v484 = vpop.f32.mrb[0].mxu0
    %485 = vdwg.mxu0
    %vm486 = vcmask 31744
    %487 = vst.msk [vmem:[%s7] sm:$0xff] %vm486, %v472
    %488 = vst.msk [vmem:[%s7 + $0x8] sm:$0xff] %vm486, %v475
    %489 = vst.msk [vmem:[%s7 + $0x10] sm:$0xff] %vm486, %v480
    %490 = vst.msk [vmem:[%s7 + $0x18] sm:$0xff] %vm486, %v483
    // Predicated region
    $region46: #{tpu_custom_call.1} parent=1 // pred_check
      _
    $region47: #{tpu_custom_call.1} parent=1 // pred_check_branch
      %492 = sbr.rel (0) target = $region49
    $region48: #{tpu_custom_call.1} parent=1 // pred_region
      _
    $region49: #{tpu_custom_call.1} parent=1 // pred_fallthru
      _
    // Predicated region
    $region50: #{tpu_custom_call.1} parent=1 // pred_check
      _
    $region51: #{tpu_custom_call.1} parent=1 // pred_check_branch
      %494 = sbr.rel (0) target = $region53
    $region52: #{tpu_custom_call.1} parent=1 // pred_region
      _
    $region53: #{tpu_custom_call.1} parent=1 // pred_fallthru
      _
    %495 = vsyncpa [#allocation3], 1
    %496 = vsyncpa [#allocation5], 1
    %497 = vsyncpa [#allocation8], 1

</llo_original>
